<compile_context>
chip_gen: v5e
topology: v5e:2x2
jax: 0.10.0
libtpu: 0.0.40
codegen_flags: <defaults>
</compile_context>

<pallas_src>
import jax
import jax.numpy as jnp
from jax.experimental import pallas as pl
from jax.experimental.pallas import tpu as pltpu


def _make_wconv_kernel(nb):
    def kernel(w_ref, x_ref, o_ref):
        # w_ref: (V, C)        resident weight (same block every grid step)
        # x_ref: (Nb, C, Tt)   spatial tile of Nb batch elements, lanes = spatial
        # o_ref: (Nb, V, Tt)   lane-dense output tile
        w = w_ref[...]
        for i in range(nb):  # static unroll over the batch block
            o_ref[i] = jnp.dot(
                w, x_ref[i], preferred_element_type=jnp.float32
            ).astype(o_ref.dtype)

    return kernel


def _pick_spatial_tile(T, max_tile):
    """Lane tile along the W*L axis: full T, a 128-multiple divisor, or a
    128-multiple cap (ragged last tile handled by Pallas masking)."""
    max_tile = max(128, int(max_tile))
    if T <= max_tile:
        return T                                  # single full-extent tile
    cap = (max_tile // 128) * 128
    for cand in range(cap, 127, -128):            # any 128-multiple divisor of T
        if T % cand == 0:
            return cand
    return cap                                    # ragged tail tile, masked stores


def _pick_batch_block(N, C, V, Tt, itemsize, target_step_bytes, vmem_budget):
    """Batch elements per grid step so each step moves >= target bytes of x+out
    while keeping the double-buffered VMEM footprint under budget."""
    per_elem = (C + V) * Tt * itemsize
    nb_vmem = max(1, vmem_budget // (2 * per_elem))
    nb_target = max(1, (target_step_bytes + per_elem - 1) // per_elem)
    return int(min(N, nb_target, nb_vmem))


def wconv(x, W, *, max_tile=8192, target_step_bytes=4 << 20, vmem_budget=40 << 20):
    """einsum('ncwl,vc->nvwl') on TPU.  x: (N,C,W,L), W: (V,C)."""
    N, C, Wdim, L = x.shape
    V, C2 = W.shape
    assert C == C2, "channel mismatch"

    T = Wdim * L
    x3 = x.reshape(N, C, T)                       # zero-copy: spatial stays in lanes
    itemsize = jnp.dtype(x.dtype).itemsize

    Tt = _pick_spatial_tile(T, max_tile)
    # Shrink Tt if even a single batch element would blow the VMEM budget
    # (large-C case); stays a 128-multiple (or full T) so BlockSpecs remain legal.
    while 2 * (C + V) * Tt * itemsize > vmem_budget and Tt > 128:
        new_tt = max(128, (Tt // 2) // 128 * 128)
        if new_tt == Tt:
            break
        Tt = new_tt
    # TODO(synk): for very large C (e.g. >= 4096) add an "arbitrary" C-reduction
    # grid axis with a VMEM f32 accumulator instead of loading all channels per step.

    Nb = _pick_batch_block(N, C, V, Tt, itemsize, target_step_bytes, vmem_budget)

    grid = (pl.cdiv(N, Nb), pl.cdiv(T, Tt))       # ragged edges masked by Pallas

    out3 = pl.pallas_call(
        _make_wconv_kernel(Nb),
        out_shape=jax.ShapeDtypeStruct((N, V, T), x.dtype),
        grid_spec=pltpu.PrefetchScalarGridSpec(
            num_scalar_prefetch=0,
            grid=grid,
            in_specs=[
                # full (V, C) weight, resident across the grid
                pl.BlockSpec((V, C), lambda n, t: (0, 0)),
                # (Nb, C, Tt) slab of x
                pl.BlockSpec((Nb, C, Tt), lambda n, t: (n, 0, t)),
            ],
            out_specs=pl.BlockSpec((Nb, V, Tt), lambda n, t: (n, 0, t)),
        ),
        compiler_params=pltpu.CompilerParams(
            dimension_semantics=("parallel", "parallel"),
            vmem_limit_bytes=48 * 1024 * 1024,    # fits v7x (64 MiB) and v5e/v6e
        ),
    )(W, x3)

    # zero-copy reshape back to the PyTorch output layout
    return out3.reshape(N, V, Wdim, L)


if __name__ == "__main__":
    key = jax.random.PRNGKey(0)
    kx, kw = jax.random.split(key)

    # small shapes consistent with the module's forward
    N, C, Wdim, L = 2, 4, 16, 16
    V = 8

    x = jax.random.normal(kx, (N, C, Wdim, L), dtype=jnp.float32)
    W = jax.random.normal(kw, (V, C), dtype=jnp.float32)

    out = jax.block_until_ready(wconv(x, W))

    # reference check against plain-JAX einsum (same semantics as torch.einsum)
    ref = jnp.einsum("ncwl,vc->nvwl", x, W)
    assert out.shape == (N, V, Wdim, L)
    assert jnp.allclose(out, ref, atol=1e-4, rtol=1e-4), float(
        jnp.max(jnp.abs(out - ref))
    )

    print("KERNEL_OK")
</pallas_src>

<mosaic_0001>
module attributes {stable_mosaic.version = 11 : i64} {
  func.func @kernel(%arg0: i32, %arg1: i32, %arg2: memref<8x4xf32, #tpu.memory_space<vmem>>, %arg3: memref<2x4x256xf32, #tpu.memory_space<vmem>>, %arg4: memref<2x8x256xf32, #tpu.memory_space<vmem>>) attributes {dimension_semantics = [#tpu.dimension_semantics<parallel>, #tpu.dimension_semantics<parallel>], iteration_bounds = array<i64: 1, 1>, scalar_prefetch = 0 : i64, scratch_operands = 0 : i64, tpu.core_type = #tpu.core_type<tc>, window_params = [{pipeline_mode = #tpu.pipeline_mode<synchronous>, transform_indices = @transform_0, window_bounds = array<i64: 8, 4>}, {transform_indices = @transform_1, window_bounds = array<i64: 2, 4, 256>}, {transform_indices = @transform_2, window_bounds = array<i64: 2, 8, 256>}]} {
    %c0 = arith.constant 0 : index
    %c0_0 = arith.constant 0 : index
    %0 = vector.load %arg2[%c0, %c0_0] : memref<8x4xf32, #tpu.memory_space<vmem>>, vector<8x4xf32>
    %c0_1 = arith.constant 0 : index
    %c0_2 = arith.constant 0 : index
    %c0_3 = arith.constant 0 : index
    %1 = vector.load %arg3[%c0_1, %c0_2, %c0_3] : memref<2x4x256xf32, #tpu.memory_space<vmem>>, vector<1x4x256xf32>
    %2 = vector.shape_cast %1 : vector<1x4x256xf32> to vector<4x256xf32>
    %cst = arith.constant dense<0.000000e+00> : vector<8x256xf32>
    %3 = tpu.matmul %0, %2, %cst {dimension_numbers = #tpu.dot_dimension_numbers<[1], [0], [0], [1], [0, 0, 1, 1], [], []>} : vector<8x4xf32>, vector<4x256xf32>, vector<8x256xf32> -> vector<8x256xf32>
    %c0_4 = arith.constant 0 : index
    %c0_5 = arith.constant 0 : index
    %c0_6 = arith.constant 0 : index
    %4 = vector.load %arg4[%c0_4, %c0_5, %c0_6] : memref<2x8x256xf32, #tpu.memory_space<vmem>>, vector<1x8x256xf32>
    %5 = vector.shape_cast %4 : vector<1x8x256xf32> to vector<8x256xf32>
    %6 = vector.shape_cast %3 : vector<8x256xf32> to vector<1x8x256xf32>
    tpu.vector_store %arg4[%c0_4, %c0_5, %c0_6], %6 {strides = array<i32>} : memref<2x8x256xf32, #tpu.memory_space<vmem>>, vector<1x8x256xf32>,
    %c1 = arith.constant 1 : index
    %c0_7 = arith.constant 0 : index
    %c0_8 = arith.constant 0 : index
    %7 = vector.load %arg3[%c1, %c0_7, %c0_8] : memref<2x4x256xf32, #tpu.memory_space<vmem>>, vector<1x4x256xf32>
    %8 = vector.shape_cast %7 : vector<1x4x256xf32> to vector<4x256xf32>
    %cst_9 = arith.constant dense<0.000000e+00> : vector<8x256xf32>
    %9 = tpu.matmul %0, %8, %cst_9 {dimension_numbers = #tpu.dot_dimension_numbers<[1], [0], [0], [1], [0, 0, 1, 1], [], []>} : vector<8x4xf32>, vector<4x256xf32>, vector<8x256xf32> -> vector<8x256xf32>
    %c1_10 = arith.constant 1 : index
    %c0_11 = arith.constant 0 : index
    %c0_12 = arith.constant 0 : index
    %10 = vector.load %arg4[%c1_10, %c0_11, %c0_12] : memref<2x8x256xf32, #tpu.memory_space<vmem>>, vector<1x8x256xf32>
    %11 = vector.shape_cast %10 : vector<1x8x256xf32> to vector<8x256xf32>
    %12 = vector.shape_cast %9 : vector<8x256xf32> to vector<1x8x256xf32>
    tpu.vector_store %arg4[%c1_10, %c0_11, %c0_12], %12 {strides = array<i32>} : memref<2x8x256xf32, #tpu.memory_space<vmem>>, vector<1x8x256xf32>,
    return
  }
  func.func @transform_0(%arg0: i32, %arg1: i32) -> (i32, i32) {
    %c0_i32 = arith.constant 0 : i32
    %c0_i32_0 = arith.constant 0 : i32
    %c0_i32_1 = arith.constant 0 : i32
    return %c0_i32, %c0_i32_0 : i32, i32
  }
  func.func @transform_1(%arg0: i32, %arg1: i32) -> (i32, i32, i32) {
    %c0_i32 = arith.constant 0 : i32
    %c0_i32_0 = arith.constant 0 : i32
    return %arg0, %c0_i32, %arg1 : i32, i32, i32
  }
  func.func @transform_2(%arg0: i32, %arg1: i32) -> (i32, i32, i32) {
    %c0_i32 = arith.constant 0 : i32
    %c0_i32_0 = arith.constant 0 : i32
    return %arg0, %c0_i32, %arg1 : i32, i32, i32
  }
}

</mosaic_0001>

<llo_original>
// kernel: tpu_custom_call.1
$region0: #{tpu_custom_call.1}
  #allocation0 [shape = 'u32[]', space=smem, size = 0x4, offset = 0x4, fixed_abs, tag = 'smem constant byte address 0x4 - core index']
  #allocation1 [shape = 'u32[72,128]{1,0:T(1,128)}', space=vmem, size = 0x9000, scoped, tag = 'internal scratch']
  %s0 = inlined_call_operand.vmem [shape: f32[8,4], index: 0, kind: input, shape index: {}]
  %s1 = inlined_call_operand.hbm [shape: f32[2,4,256], index: 1, kind: input, shape index: {}]
  %s2 = inlined_call_operand.hbm [shape: f32[2,8,256], index: 2, kind: output, shape index: {}]
  %s3 = sld [smem:[#allocation0]]
  $region22: #{tpu_custom_call.1} parent=0
    _
  %s5 = ssub.s32 1, %s3
  %s6 = scalar_select 0, %s5, %s3
  $region1: #{tpu_custom_call.1} parent=0
    #allocation2 [shape = 'u8[8192]{0}', space=vmem, size = 0x2000, scoped, tag = 'input window, operand 1, single buffered']
    #allocation3 [shape = 's32[1]{0}', space=sflag, size = 0x4, scoped, tag = 'scoped memory for tpu_custom_call.1']
    #allocation4 [shape = 's32[1]{0}', space=sflag, size = 0x4, scoped, tag = 'scoped memory for tpu_custom_call.1']
    #allocation5 [shape = 'u8[16384]{0}', space=vmem, size = 0x4000, scoped, tag = 'output window, operand 0, single buffered']
    %7 = vsyncpa [#allocation3], 0
    %8 = vsyncpa [#allocation4], 0
    // Predicated region
    $region2: #{tpu_custom_call.1} parent=1 // pred_check
      _
    $region3: #{tpu_custom_call.1} parent=1 // pred_check_branch
      %10 = sbr.rel (0) target = $region5
    $region4: #{tpu_custom_call.1} parent=1 // pred_region
      _
    $region5: #{tpu_custom_call.1} parent=1 // pred_fallthru
      _
    // Predicated region
    $region6: #{tpu_custom_call.1} parent=1 // pred_check
      _
    $region7: #{tpu_custom_call.1} parent=1 // pred_check_branch
      %12 = sbr.rel (0) target = $region9
    $region8: #{tpu_custom_call.1} parent=1 // pred_region
      %14 = vsyncadd [#allocation3], 0
      %s15 = sshll.u32 %s1, 4
      %s16 = int_to_ptr.hbm [resolvable:$true] %s15
      %s17 = sshll.u32 [#allocation2], 4
      %s18 = int_to_ptr.vmem [resolvable:$true] %s17
      %23 = dma.hbm_to_vmem [thread:$0]  %s16, 256, %s18, [#allocation3], 128, 128, 8
    $region9: #{tpu_custom_call.1} parent=1 // pred_fallthru
      _
    // Predicated region
    $region10: #{tpu_custom_call.1} parent=1 // pred_check
      _
    $region11: #{tpu_custom_call.1} parent=1 // pred_check_branch
      %25 = sbr.rel (0) target = $region13
    $region12: #{tpu_custom_call.1} parent=1 // pred_region
      %27 = dma.done [#allocation3], 256
    $region13: #{tpu_custom_call.1} parent=1 // pred_fallthru
      _
    %v28 = vld [vmem:[%s0] sm:$0xff]
    %v29 = vld [vmem:[#allocation2] sm:$0xff]
    %31 = vst [vmem:[#allocation1] ss:$2 sm:$0xff] %v29
    %v32 = vld.sshfl [vmem:[#allocation1] sm:$0xff pattern:$0x75316420]
    %v33 = vld.sshfl [vmem:[#allocation1 + $0x8] sm:$0xff pattern:$0x75316420]
    %vm34 = vcmask 31744
    %v36 = vsel %vm34, %v28, 0
    %vm38 = vcmask 1043456
    %v39 = vsel %vm38, %v32, 0
    %v41 = vsel %vm38, %v33, 0
    %43 = vmatpush.msra.mxu0 0.0
    %44 = vmatpush.msra.mxu0 0.0
    %45 = vmatpush.msra.mxu0 0.0
    %46 = vmatpush.msra.mxu0 0.0
    %47 = vmatpush.msra.mxu0 0.0
    %48 = vmatpush.msra.mxu0 0.0
    %49 = vmatpush.msra.mxu0 0.0
    %50 = vmatpush.msra.mxu0 0.0
    %51 = vmatpush.msra.mxu0 0.0
    %52 = vmatpush.msra.mxu0 0.0
    %53 = vmatpush.msra.mxu0 0.0
    %54 = vmatpush.msra.mxu0 0.0
    %55 = vmatpush.msra.mxu0 0.0
    %56 = vmatpush.msra.mxu0 0.0
    %57 = vmatpush.msra.mxu0 0.0
    %58 = vmatpush.msra.mxu0 %v39
    %59 = vmatmul.f32.gmra.mxu0 %v36
    %v60 = vpop.f32.mrf.mxu0
    %v61 = vadd.f32 0.0, %v60
    %62 = vdwg.mxu0
    %63 = vmatpush.msra.mxu0 0.0
    %64 = vmatpush.msra.mxu0 0.0
    %65 = vmatpush.msra.mxu0 0.0
    %66 = vmatpush.msra.mxu0 0.0
    %67 = vmatpush.msra.mxu0 0.0
    %68 = vmatpush.msra.mxu0 0.0
    %69 = vmatpush.msra.mxu0 0.0
    %70 = vmatpush.msra.mxu0 0.0
    %71 = vmatpush.msra.mxu0 0.0
    %72 = vmatpush.msra.mxu0 0.0
    %73 = vmatpush.msra.mxu0 0.0
    %74 = vmatpush.msra.mxu0 0.0
    %75 = vmatpush.msra.mxu0 0.0
    %76 = vmatpush.msra.mxu0 0.0
    %77 = vmatpush.msra.mxu0 0.0
    %78 = vmatpush.msra.mxu0 %v41
    %79 = vmatmul.f32.gmra.mxu0 %v36
    %v80 = vpop.f32.mrf.mxu0
    %v81 = vadd.f32 0.0, %v80
    %82 = vdwg.mxu0
    %83 = vst [vmem:[#allocation5] sm:$0xff] %v61
    %84 = vst [vmem:[#allocation5 + $0x8] sm:$0xff] %v81
    %s85 = scalar_lea.vmem [#allocation2], 8
    %v86 = vld [vmem:[%s85] sm:$0xff]
    %88 = vst [vmem:[#allocation1] ss:$2 sm:$0xff] %v86
    %v89 = vld.sshfl [vmem:[#allocation1] sm:$0xff pattern:$0x75316420]
    %v90 = vld.sshfl [vmem:[#allocation1 + $0x8] sm:$0xff pattern:$0x75316420]
    %v91 = vsel %vm38, %v89, 0
    %v93 = vsel %vm38, %v90, 0
    %95 = vmatpush.msra.mxu0 0.0
    %96 = vmatpush.msra.mxu0 0.0
    %97 = vmatpush.msra.mxu0 0.0
    %98 = vmatpush.msra.mxu0 0.0
    %99 = vmatpush.msra.mxu0 0.0
    %100 = vmatpush.msra.mxu0 0.0
    %101 = vmatpush.msra.mxu0 0.0
    %102 = vmatpush.msra.mxu0 0.0
    %103 = vmatpush.msra.mxu0 0.0
    %104 = vmatpush.msra.mxu0 0.0
    %105 = vmatpush.msra.mxu0 0.0
    %106 = vmatpush.msra.mxu0 0.0
    %107 = vmatpush.msra.mxu0 0.0
    %108 = vmatpush.msra.mxu0 0.0
    %109 = vmatpush.msra.mxu0 0.0
    %110 = vmatpush.msra.mxu0 %v91
    %111 = vmatmul.f32.gmra.mxu0 %v36
    %v112 = vpop.f32.mrf.mxu0
    %v113 = vadd.f32 0.0, %v112
    %114 = vdwg.mxu0
    %115 = vmatpush.msra.mxu0 0.0
    %116 = vmatpush.msra.mxu0 0.0
    %117 = vmatpush.msra.mxu0 0.0
    %118 = vmatpush.msra.mxu0 0.0
    %119 = vmatpush.msra.mxu0 0.0
    %120 = vmatpush.msra.mxu0 0.0
    %121 = vmatpush.msra.mxu0 0.0
    %122 = vmatpush.msra.mxu0 0.0
    %123 = vmatpush.msra.mxu0 0.0
    %124 = vmatpush.msra.mxu0 0.0
    %125 = vmatpush.msra.mxu0 0.0
    %126 = vmatpush.msra.mxu0 0.0
    %127 = vmatpush.msra.mxu0 0.0
    %128 = vmatpush.msra.mxu0 0.0
    %129 = vmatpush.msra.mxu0 0.0
    %130 = vmatpush.msra.mxu0 %v93
    %131 = vmatmul.f32.gmra.mxu0 %v36
    %v132 = vpop.f32.mrf.mxu0
    %v133 = vadd.f32 0.0, %v132
    %134 = vdwg.mxu0
    %s135 = scalar_lea.vmem [#allocation5], 16
    %136 = vst [vmem:[%s135] sm:$0xff] %v113
    %137 = vst [vmem:[%s135 + $0x8] sm:$0xff] %v133
    // Predicated region
    $region14: #{tpu_custom_call.1} parent=1 // pred_check
      _
    $region15: #{tpu_custom_call.1} parent=1 // pred_check_branch
      %139 = sbr.rel (0) target = $region17
    $region16: #{tpu_custom_call.1} parent=1 // pred_region
      %141 = vsyncadd [#allocation4], 0
      %s142 = sshll.u32 [#allocation5], 4
      %s143 = int_to_ptr.vmem [resolvable:$true] %s142
      %s144 = sshll.u32 %s2, 4
      %s145 = int_to_ptr.hbm [resolvable:$true] %s144
      %150 = dma.vmem_to_hbm [thread:$0]  %s143, 512, %s145, [#allocation4], 256, 256, 16
    $region17: #{tpu_custom_call.1} parent=1 // pred_fallthru
      _
    // Predicated region
    $region18: #{tpu_custom_call.1} parent=1 // pred_check
      _
    $region19: #{tpu_custom_call.1} parent=1 // pred_check_branch
      %152 = sbr.rel (0) target = $region21
    $region20: #{tpu_custom_call.1} parent=1 // pred_region
      %154 = dma.done [#allocation4], 512
    $region21: #{tpu_custom_call.1} parent=1 // pred_fallthru
      _
    %155 = vsyncpa [#allocation3], 1
    %156 = vsyncpa [#allocation4], 1

</llo_original>
